<compile_context>
chip_gen: v7x
topology: tpu7x:2x2x1
jax: 0.10.0
libtpu: 0.0.40
codegen_flags: <defaults>
</compile_context>

<pallas_src>
import functools
import numpy as np

import jax
import jax.numpy as jnp
from jax import lax
from jax.experimental import pallas as pl
from jax.experimental.pallas import tpu as pltpu


def _round_up(x, m):
    return ((x + m - 1) // m) * m


def _vmem_capacity_bytes():
    """Physical per-core VMEM; conservative 64 MiB (v7x) fallback."""
    try:
        return int(pltpu.get_tpu_info().vmem_capacity_bytes)
    except Exception:
        return 64 * 1024 * 1024


# ---------------------------------------------------------------------------
# Kernel
# ---------------------------------------------------------------------------
def temporal_block_kernel(*refs, K, dilation, pad, pad_r, TL, mode):
    """One (batch, time-tile) step of the fused TemporalBlock forward.

    mode == "identity":  refs = (x, w1, b1, w2, b2, out, xcar, hcar)
                         residual = x (Cin == Cout, no downsample).
    mode == "fused":     refs = (x, w1ext, b1ext, w2, b2, out, xcar, hcar)
                         w1ext/b1ext carry the 1x1 downsample in cols [C:2C].
    mode == "separate":  refs = (x, w1, b1, w2, b2, wd, bd, out, xcar, hcar)
                         residual = x @ wd + bd as a separate matmul.

    x    : (1, TL, Cin_p)  f32, channels-last, lane-padded
    w1   : (K*Cin_p, C1)   bf16 im2col-folded conv1 weight (C1 = Cout_p or 2*Cout_p)
    w2   : (K*Cout_p, Cout_p) bf16
    out  : (1, TL, Cout_p) f32
    xcar : (pad_r, Cin_p)  bf16 carry: last pad_r input rows of previous tiles
    hcar : (pad_r, Cout_p) bf16 carry: last pad_r conv1-output rows
    """
    if mode == "separate":
        (x_ref, w1_ref, b1_ref, w2_ref, b2_ref, wd_ref, bd_ref,
         out_ref, xcar_ref, hcar_ref) = refs
    else:
        (x_ref, w1_ref, b1_ref, w2_ref, b2_ref,
         out_ref, xcar_ref, hcar_ref) = refs

    cout_p = out_ref.shape[-1]
    t = pl.program_id(1)

    # New batch element -> causal history is zeros (matches Conv1d zero padding).
    @pl.when(t == 0)
    def _():
        xcar_ref[...] = jnp.zeros_like(xcar_ref)
        hcar_ref[...] = jnp.zeros_like(hcar_ref)

    x = x_ref[0]                          # (TL, Cin_p) f32
    xb = x.astype(jnp.bfloat16)           # bf16 MXU operand
    off = pad_r - pad                     # alignment slack inside the carry window

    # ---- conv1 (+ fused 1x1 downsample): im2col -> single bf16 MXU matmul ----
    xw = jnp.concatenate([xcar_ref[...], xb], axis=0)            # (pad_r+TL, Cin_p) bf16
    xim = jnp.concatenate(
        [xw[off + j * dilation: off + j * dilation + TL, :] for j in range(K)],
        axis=-1)                                                 # (TL, K*Cin_p) bf16
    y1 = jnp.dot(xim, w1_ref[...],
                 preferred_element_type=jnp.float32) + b1_ref[...]   # f32 accum

    if mode == "fused":
        h1 = jnp.maximum(y1[:, :cout_p], 0.0)        # relu1; dropout1 = identity
        res = y1[:, cout_p:]                         # 1x1 downsample rode along
    else:
        h1 = jnp.maximum(y1, 0.0)
        if mode == "separate":
            res = jnp.dot(xb, wd_ref[...],
                          preferred_element_type=jnp.float32) + bd_ref[...]
        else:                                        # identity residual, exact f32
            res = x

    # ---- conv2: same scheme on h1 (h1 never leaves VMEM/vregs) ----
    h1b = h1.astype(jnp.bfloat16)
    hw = jnp.concatenate([hcar_ref[...], h1b], axis=0)           # (pad_r+TL, Cout_p) bf16
    him = jnp.concatenate(
        [hw[off + j * dilation: off + j * dilation + TL, :] for j in range(K)],
        axis=-1)                                                 # (TL, K*Cout_p) bf16
    h2 = jnp.maximum(
        jnp.dot(him, w2_ref[...], preferred_element_type=jnp.float32) + b2_ref[...],
        0.0)                                                     # relu2; dropout2 = id

    # ---- residual + final ReLU ----
    out_ref[0] = jnp.maximum(h2 + res, 0.0).astype(out_ref.dtype)

    # ---- carry the last pad_r rows forward for the next time tile ----
    xcar_ref[...] = xw[TL:, :]
    hcar_ref[...] = hw[TL:, :]


# ---------------------------------------------------------------------------
# Wrapper: layout/padding glue + pallas_call
# ---------------------------------------------------------------------------
@functools.partial(jax.jit, static_argnames=("kernel_size", "dilation", "time_tile"))
def temporal_block_forward(x_ncl, params, *, kernel_size, dilation, time_tile=512):
    """x_ncl: (B, Cin, L) float32 (PyTorch NCW).  Returns (B, Cout, L) float32.

    params: torch-layout dict {w1:(O,I,K), b1:(O,), w2:(O,O,K), b2:(O,),
                               wd:(O,I,1) or None, bd:(O,) or None}.
    """
    B, Cin, L = x_ncl.shape
    K = kernel_size
    Cout = params['w1'].shape[0]
    has_downsample = params['wd'] is not None   # torch: downsample=None iff Cin==Cout

    pad = (K - 1) * dilation
    pad_r = max(16, _round_up(pad, 16))          # bf16-sublane-aligned carry window
    cin_p = _round_up(Cin, 128)                  # lane-dense channels
    cout_p = _round_up(Cout, 128)
    if not has_downsample:
        cin_p = cout_p = max(cin_p, cout_p)      # identity residual needs equal lanes

    # Time tile: large to amortize per-step overhead, shrunk for wide channels /
    # small-VMEM parts (v7x = 64 MiB) so double-buffered tiles + weights fit.
    vmem_cap = _vmem_capacity_bytes()
    ch = max(cin_p, cout_p)
    tl_cap = time_tile
    if ch >= 512 or (vmem_cap <= 64 * 1024 * 1024 and ch >= 256):
        tl_cap = min(tl_cap, 256)
    TL = _round_up(min(tl_cap, L), 16)
    L_p = _round_up(L, TL)
    NT = L_p // TL

    if not has_downsample:
        mode = "identity"
    elif cout_p == 128:
        mode = "fused"        # fold 1x1 downsample into conv1's RHS (fills 256-wide MXU)
    else:
        mode = "separate"

    # ---- fold weight layouts for im2col: (O,I,K) -> (K*Cin_p, Cout_p) ----
    def fold(w_oik, ci, ci_p):
        w = jnp.transpose(w_oik, (2, 1, 0)).astype(jnp.float32)       # (K, I, O)
        w = jnp.pad(w, ((0, 0), (0, ci_p - ci), (0, cout_p - Cout)))
        return w.reshape(K * ci_p, cout_p)

    def pad_bias(b):
        return jnp.pad(b.astype(jnp.float32), (0, cout_p - Cout)).reshape(1, cout_p)

    w1 = fold(params['w1'], Cin, cin_p)
    b1 = pad_bias(params['b1'])
    w2 = fold(params['w2'], Cout, cout_p)
    b2 = pad_bias(params['b2'])

    extra_args = ()
    extra_specs = []
    if mode == "fused":
        # Lift the 1x1 downsample into the last causal tap's rows, as extra columns.
        wd_p = jnp.pad(params['wd'][:, :, 0].T.astype(jnp.float32),
                       ((0, cin_p - Cin), (0, cout_p - Cout)))        # (Cin_p, Cout_p)
        wd_lift = jnp.zeros((K * cin_p, cout_p), jnp.float32)
        wd_lift = wd_lift.at[(K - 1) * cin_p:, :].set(wd_p)
        w1 = jnp.concatenate([w1, wd_lift], axis=1)                   # (K*Cin_p, 2*Cout_p)
        b1 = jnp.concatenate([b1, pad_bias(params['bd'])], axis=1)    # (1, 2*Cout_p)
    elif mode == "separate":
        wd = jnp.pad(params['wd'][:, :, 0].T.astype(jnp.float32),
                     ((0, cin_p - Cin), (0, cout_p - Cout))).astype(jnp.bfloat16)
        bd = pad_bias(params['bd'])
        extra_args = (wd, bd)
        extra_specs = [pl.BlockSpec((cin_p, cout_p), lambda b, t: (0, 0)),
                       pl.BlockSpec((1, cout_p), lambda b, t: (0, 0))]

    # bf16 MXU operands (f32 accumulation stays inside the kernel's jnp.dot).
    w1 = w1.astype(jnp.bfloat16)
    w2 = w2.astype(jnp.bfloat16)
    nc1 = w1.shape[1]                               # Cout_p or 2*Cout_p

    # ---- channels-last, zero-padded (time to L_p, channels to lane multiple) ----
    x_blc = jnp.transpose(x_ncl, (0, 2, 1)).astype(jnp.float32)
    x_blc = jnp.pad(x_blc, ((0, 0), (0, L_p - L), (0, cin_p - Cin)))

    kern = functools.partial(temporal_block_kernel, K=K, dilation=dilation,
                             pad=pad, pad_r=pad_r, TL=TL, mode=mode)

    flops = 2 * B * L_p * (K * cin_p * nc1 + K * cout_p * cout_p)
    if mode == "separate":
        flops += 2 * B * L_p * cin_p * cout_p
    bytes_accessed = (4 * x_blc.size + 4 * B * L_p * cout_p
                      + 2 * (w1.size + w2.size) + 4 * (b1.size + b2.size))
    if mode == "separate":
        bytes_accessed += 2 * extra_args[0].size + 4 * extra_args[1].size

    # VMEM budget: double-buffered f32 x/out tiles, double-buffered bf16 weights,
    # bf16 carries, and the live bf16/f32 temporaries; clamped below physical VMEM.
    vmem_est = (4 * 2 * TL * (cin_p + cout_p)                  # x / out tiles (x2 bufs)
                + 2 * 2 * (w1.size + w2.size)                  # bf16 weights (x2 bufs)
                + 4 * 2 * (b1.size + b2.size)
                + 2 * pad_r * (cin_p + cout_p)                 # carries (bf16)
                + 2 * (pad_r + TL) * (cin_p + cout_p)          # xw / hw (bf16)
                + 2 * TL * K * (cin_p + cout_p)                # xim / him (bf16)
                + 4 * TL * (nc1 + 3 * cout_p + cin_p))         # f32 temps
    if mode == "separate":
        vmem_est += 2 * 2 * cin_p * cout_p
    vmem_limit = int(min(int(0.85 * vmem_cap),
                         max(32 * 1024 * 1024, vmem_est + (8 << 20))))

    out = pl.pallas_call(
        kern,
        out_shape=jax.ShapeDtypeStruct((B, L_p, cout_p), jnp.float32),
        grid=(B, NT),
        in_specs=[
            pl.BlockSpec((1, TL, cin_p), lambda b, t: (b, t, 0)),        # x tile
            pl.BlockSpec((K * cin_p, nc1), lambda b, t: (0, 0)),         # w1 (bf16)
            pl.BlockSpec((1, nc1), lambda b, t: (0, 0)),                 # b1
            pl.BlockSpec((K * cout_p, cout_p), lambda b, t: (0, 0)),     # w2 (bf16)
            pl.BlockSpec((1, cout_p), lambda b, t: (0, 0)),              # b2
        ] + extra_specs,
        out_specs=pl.BlockSpec((1, TL, cout_p), lambda b, t: (b, t, 0)),
        scratch_shapes=[pltpu.VMEM((pad_r, cin_p), jnp.bfloat16),
                        pltpu.VMEM((pad_r, cout_p), jnp.bfloat16)],
        compiler_params=pltpu.CompilerParams(
            dimension_semantics=("parallel", "arbitrary"),   # batch across TCs (v7x)
            vmem_limit_bytes=vmem_limit),
        cost_estimate=pl.CostEstimate(flops=int(flops), transcendentals=0,
                                      bytes_accessed=int(bytes_accessed)),
    )(x_blc, w1, b1, w2, b2, *extra_args)

    out = out[:, :L, :Cout]
    return jnp.transpose(out, (0, 2, 1))


# ---------------------------------------------------------------------------
# Parameter construction (deterministic, synthetic).  weight_norm folded:
#   w_eff = g * v / ||v||  (norm over all dims except the out-channel dim,
#   matching torch.nn.utils.weight_norm(dim=0) on Conv1d weights).
# ---------------------------------------------------------------------------
def make_params(key, n_in, n_out, K):
    ks = jax.random.split(key, 8)

    def weight_normed(kv, kg, shape):
        v = 0.01 * jax.random.normal(kv, shape, jnp.float32)
        g = 1.0 + 0.1 * jax.random.normal(kg, (shape[0], 1, 1), jnp.float32)
        norm = jnp.sqrt(jnp.sum(v * v, axis=(1, 2), keepdims=True))
        return g * v / norm                                   # (O, I, K)

    tp = dict(
        w1=weight_normed(ks[0], ks[1], (n_out, n_in, K)),
        b1=0.01 * jax.random.normal(ks[2], (n_out,), jnp.float32),
        w2=weight_normed(ks[3], ks[4], (n_out, n_out, K)),
        b2=0.01 * jax.random.normal(ks[5], (n_out,), jnp.float32),
    )
    if n_in != n_out:
        tp['wd'] = 0.01 * jax.random.normal(ks[6], (n_out, n_in, 1), jnp.float32)
        tp['bd'] = 0.01 * jax.random.normal(ks[7], (n_out,), jnp.float32)
    else:  # PyTorch uses an identity residual when n_inputs == n_outputs
        tp['wd'] = None
        tp['bd'] = None
    return tp


# ---------------------------------------------------------------------------
# Pure-JAX f32 reference mirroring the PyTorch module (NCW layout, symmetric
# padding followed by Chomp1d, eval-mode dropout).
# ---------------------------------------------------------------------------
def ref_forward(x_ncl, tp, *, kernel_size, dilation):
    pad = (kernel_size - 1) * dilation
    L = x_ncl.shape[2]
    dn = ('NCH', 'OIH', 'NCH')

    def causal_conv(x, w, b):
        y = lax.conv_general_dilated(x, w, window_strides=(1,),
                                     padding=[(pad, pad)],
                                     rhs_dilation=(dilation,),
                                     dimension_numbers=dn)
        return (y + b[None, :, None])[:, :, :L]               # Chomp1d(pad)

    h1 = jnp.maximum(causal_conv(x_ncl, tp['w1'], tp['b1']), 0.0)
    h2 = jnp.maximum(causal_conv(h1, tp['w2'], tp['b2']), 0.0)
    if tp['wd'] is not None:
        res = lax.conv_general_dilated(x_ncl, tp['wd'], (1,), [(0, 0)],
                                       dimension_numbers=dn) + tp['bd'][None, :, None]
    else:
        res = x_ncl
    return jnp.maximum(h2 + res, 0.0)


if __name__ == "__main__":
    # TemporalBlock(n_inputs, n_outputs, kernel_size=3, stride=1, dilation=2,
    #               padding=(3-1)*2=4, dropout=0.2, pool=False)
    K, DIL = 3, 2
    key = jax.random.PRNGKey(0)
    kx1, kp1, kx2, kp2 = jax.random.split(key, 4)

    # bf16 MXU operands with f32 accumulation -> compare to the f32 reference
    # at a bf16-appropriate tolerance.
    RTOL = ATOL = 5e-2

    # Case 1: n_inputs != n_outputs  ->  1x1 downsample fused into conv1's RHS.
    B, CIN, COUT, L = 2, 4, 8, 16
    x1 = jax.random.normal(kx1, (B, CIN, L), jnp.float32)
    tp1 = make_params(kp1, CIN, COUT, K)
    out1 = jax.block_until_ready(
        temporal_block_forward(x1, tp1, kernel_size=K, dilation=DIL))
    ref1 = ref_forward(x1, tp1, kernel_size=K, dilation=DIL)
    np.testing.assert_allclose(np.asarray(out1), np.asarray(ref1), rtol=RTOL, atol=ATOL)
    assert out1.shape == (B, COUT, L)

    # Case 2: n_inputs == n_outputs  ->  identity residual (downsample=None).
    x2 = jax.random.normal(kx2, (B, COUT, L), jnp.float32)
    tp2 = make_params(kp2, COUT, COUT, K)
    out2 = jax.block_until_ready(
        temporal_block_forward(x2, tp2, kernel_size=K, dilation=DIL))
    ref2 = ref_forward(x2, tp2, kernel_size=K, dilation=DIL)
    np.testing.assert_allclose(np.asarray(out2), np.asarray(ref2), rtol=RTOL, atol=ATOL)
    assert out2.shape == (B, COUT, L)

    print("KERNEL_OK")
</pallas_src>

<mosaic_0001>
module attributes {stable_mosaic.version = 11 : i64} {
  func.func @temporal_block_kernel(%arg0: i32, %arg1: i32, %arg2: memref<1x16x128xf32, #tpu.memory_space<vmem>>, %arg3: memref<384x256xbf16, #tpu.memory_space<vmem>>, %arg4: memref<1x256xf32, #tpu.memory_space<vmem>>, %arg5: memref<384x128xbf16, #tpu.memory_space<vmem>>, %arg6: memref<1x128xf32, #tpu.memory_space<vmem>>, %arg7: memref<1x16x128xf32, #tpu.memory_space<vmem>>, %arg8: memref<16x128xbf16, #tpu.memory_space<vmem>>, %arg9: memref<16x128xbf16, #tpu.memory_space<vmem>>) attributes {dimension_semantics = [#tpu.dimension_semantics<parallel>, #tpu.dimension_semantics<arbitrary>], iteration_bounds = array<i64: 2, 1>, scalar_prefetch = 0 : i64, scratch_operands = 2 : i64, tpu.core_type = #tpu.core_type<tc>, window_params = [{transform_indices = @transform_0, window_bounds = array<i64: 1, 16, 128>}, {pipeline_mode = #tpu.pipeline_mode<synchronous>, transform_indices = @transform_1, window_bounds = array<i64: 384, 256>}, {pipeline_mode = #tpu.pipeline_mode<synchronous>, transform_indices = @transform_2, window_bounds = array<i64: 1, 256>}, {pipeline_mode = #tpu.pipeline_mode<synchronous>, transform_indices = @transform_3, window_bounds = array<i64: 384, 128>}, {pipeline_mode = #tpu.pipeline_mode<synchronous>, transform_indices = @transform_4, window_bounds = array<i64: 1, 128>}, {transform_indices = @transform_5, window_bounds = array<i64: 1, 16, 128>}]} {
    %c0_i32 = arith.constant 0 : i32
    %0 = arith.cmpi eq, %arg1, %c0_i32 : i32
    %1 = arith.extui %0 : i1 to i32
    %c0_i32_0 = arith.constant 0 : i32
    %2 = arith.cmpi ne, %1, %c0_i32_0 : i32
    scf.if %2 {
      %cst_26 = arith.constant 0.000000e+00 : bf16
      %45 = vector.broadcast %cst_26 : bf16 to vector<16x128xbf16>
      %c0_27 = arith.constant 0 : index
      %c0_28 = arith.constant 0 : index
      %46 = vector.load %arg8[%c0_27, %c0_28] : memref<16x128xbf16, #tpu.memory_space<vmem>>, vector<16x128xbf16>
      tpu.vector_store %arg8[%c0_27, %c0_28], %45 {strides = array<i32>} : memref<16x128xbf16, #tpu.memory_space<vmem>>, vector<16x128xbf16>,
      %cst_29 = arith.constant 0.000000e+00 : bf16
      %47 = vector.broadcast %cst_29 : bf16 to vector<16x128xbf16>
      %c0_30 = arith.constant 0 : index
      %c0_31 = arith.constant 0 : index
      %48 = vector.load %arg9[%c0_30, %c0_31] : memref<16x128xbf16, #tpu.memory_space<vmem>>, vector<16x128xbf16>
      tpu.vector_store %arg9[%c0_30, %c0_31], %47 {strides = array<i32>} : memref<16x128xbf16, #tpu.memory_space<vmem>>, vector<16x128xbf16>,
    } else {
    }
    %c0 = arith.constant 0 : index
    %c0_1 = arith.constant 0 : index
    %c0_2 = arith.constant 0 : index
    %3 = vector.load %arg2[%c0, %c0_1, %c0_2] : memref<1x16x128xf32, #tpu.memory_space<vmem>>, vector<1x16x128xf32>
    %4 = vector.shape_cast %3 : vector<1x16x128xf32> to vector<16x128xf32>
    %5 = arith.truncf %4 : vector<16x128xf32> to vector<16x128xbf16>
    %c0_3 = arith.constant 0 : index
    %c0_4 = arith.constant 0 : index
    %6 = vector.load %arg8[%c0_3, %c0_4] : memref<16x128xbf16, #tpu.memory_space<vmem>>, vector<16x128xbf16>
    %7 = tpu.concatenate %6, %5 in 0 : vector<16x128xbf16>, vector<16x128xbf16> -> vector<32x128xbf16>
    %8 = vector.extract_strided_slice %7 {offsets = [12, 0], sizes = [16, 128], strides = [1, 1]} : vector<32x128xbf16> to vector<16x128xbf16>
    %9 = vector.extract_strided_slice %7 {offsets = [14, 0], sizes = [16, 128], strides = [1, 1]} : vector<32x128xbf16> to vector<16x128xbf16>
    %10 = vector.extract_strided_slice %7 {offsets = [16, 0], sizes = [16, 128], strides = [1, 1]} : vector<32x128xbf16> to vector<16x128xbf16>
    %11 = tpu.concatenate %8, %9, %10 in 1 : vector<16x128xbf16>, vector<16x128xbf16>, vector<16x128xbf16> -> vector<16x384xbf16>
    %c0_5 = arith.constant 0 : index
    %c0_6 = arith.constant 0 : index
    %12 = vector.load %arg3[%c0_5, %c0_6] : memref<384x256xbf16, #tpu.memory_space<vmem>>, vector<384x256xbf16>
    %cst = arith.constant dense<0.000000e+00> : vector<16x256xf32>
    %13 = tpu.matmul %11, %12, %cst {dimension_numbers = #tpu.dot_dimension_numbers<[1], [0], [0], [1], [0, 0, 1, 1], [], []>} : vector<16x384xbf16>, vector<384x256xbf16>, vector<16x256xf32> -> vector<16x256xf32>
    %c0_7 = arith.constant 0 : index
    %c0_8 = arith.constant 0 : index
    %14 = vector.load %arg4[%c0_7, %c0_8] : memref<1x256xf32, #tpu.memory_space<vmem>>, vector<1x256xf32>
    %15 = vector.broadcast %14 : vector<1x256xf32> to vector<16x256xf32>
    %16 = arith.addf %13, %15 : vector<16x256xf32>
    %17 = vector.extract_strided_slice %16 {offsets = [0, 0], sizes = [16, 128], strides = [1, 1]} : vector<16x256xf32> to vector<16x128xf32>
    %cst_9 = arith.constant 0.000000e+00 : f32
    %18 = vector.broadcast %cst_9 : f32 to vector<16x128xf32>
    %19 = arith.maximumf %17, %18 : vector<16x128xf32>
    %20 = vector.extract_strided_slice %16 {offsets = [0, 128], sizes = [16, 128], strides = [1, 1]} : vector<16x256xf32> to vector<16x128xf32>
    %21 = arith.truncf %19 : vector<16x128xf32> to vector<16x128xbf16>
    %c0_10 = arith.constant 0 : index
    %c0_11 = arith.constant 0 : index
    %22 = vector.load %arg9[%c0_10, %c0_11] : memref<16x128xbf16, #tpu.memory_space<vmem>>, vector<16x128xbf16>
    %23 = tpu.concatenate %22, %21 in 0 : vector<16x128xbf16>, vector<16x128xbf16> -> vector<32x128xbf16>
    %24 = vector.extract_strided_slice %23 {offsets = [12, 0], sizes = [16, 128], strides = [1, 1]} : vector<32x128xbf16> to vector<16x128xbf16>
    %25 = vector.extract_strided_slice %23 {offsets = [14, 0], sizes = [16, 128], strides = [1, 1]} : vector<32x128xbf16> to vector<16x128xbf16>
    %26 = vector.extract_strided_slice %23 {offsets = [16, 0], sizes = [16, 128], strides = [1, 1]} : vector<32x128xbf16> to vector<16x128xbf16>
    %27 = tpu.concatenate %24, %25, %26 in 1 : vector<16x128xbf16>, vector<16x128xbf16>, vector<16x128xbf16> -> vector<16x384xbf16>
    %c0_12 = arith.constant 0 : index
    %c0_13 = arith.constant 0 : index
    %28 = vector.load %arg5[%c0_12, %c0_13] : memref<384x128xbf16, #tpu.memory_space<vmem>>, vector<384x128xbf16>
    %cst_14 = arith.constant dense<0.000000e+00> : vector<16x128xf32>
    %29 = tpu.matmul %27, %28, %cst_14 {dimension_numbers = #tpu.dot_dimension_numbers<[1], [0], [0], [1], [0, 0, 1, 1], [], []>} : vector<16x384xbf16>, vector<384x128xbf16>, vector<16x128xf32> -> vector<16x128xf32>
    %c0_15 = arith.constant 0 : index
    %c0_16 = arith.constant 0 : index
    %30 = vector.load %arg6[%c0_15, %c0_16] : memref<1x128xf32, #tpu.memory_space<vmem>>, vector<1x128xf32>
    %31 = vector.broadcast %30 : vector<1x128xf32> to vector<16x128xf32>
    %32 = arith.addf %29, %31 : vector<16x128xf32>
    %cst_17 = arith.constant 0.000000e+00 : f32
    %33 = vector.broadcast %cst_17 : f32 to vector<16x128xf32>
    %34 = arith.maximumf %32, %33 : vector<16x128xf32>
    %35 = arith.addf %34, %20 : vector<16x128xf32>
    %cst_18 = arith.constant 0.000000e+00 : f32
    %36 = vector.broadcast %cst_18 : f32 to vector<16x128xf32>
    %37 = arith.maximumf %35, %36 : vector<16x128xf32>
    %c0_19 = arith.constant 0 : index
    %c0_20 = arith.constant 0 : index
    %c0_21 = arith.constant 0 : index
    %38 = vector.load %arg7[%c0_19, %c0_20, %c0_21] : memref<1x16x128xf32, #tpu.memory_space<vmem>>, vector<1x16x128xf32>
    %39 = vector.shape_cast %38 : vector<1x16x128xf32> to vector<16x128xf32>
    %40 = vector.shape_cast %37 : vector<16x128xf32> to vector<1x16x128xf32>
    tpu.vector_store %arg7[%c0_19, %c0_20, %c0_21], %40 {strides = array<i32>} : memref<1x16x128xf32, #tpu.memory_space<vmem>>, vector<1x16x128xf32>,
    %41 = vector.extract_strided_slice %7 {offsets = [16, 0], sizes = [16, 128], strides = [1, 1]} : vector<32x128xbf16> to vector<16x128xbf16>
    %c0_22 = arith.constant 0 : index
    %c0_23 = arith.constant 0 : index
    %42 = vector.load %arg8[%c0_22, %c0_23] : memref<16x128xbf16, #tpu.memory_space<vmem>>, vector<16x128xbf16>
    tpu.vector_store %arg8[%c0_22, %c0_23], %41 {strides = array<i32>} : memref<16x128xbf16, #tpu.memory_space<vmem>>, vector<16x128xbf16>,
    %43 = vector.extract_strided_slice %23 {offsets = [16, 0], sizes = [16, 128], strides = [1, 1]} : vector<32x128xbf16> to vector<16x128xbf16>
    %c0_24 = arith.constant 0 : index
    %c0_25 = arith.constant 0 : index
    %44 = vector.load %arg9[%c0_24, %c0_25] : memref<16x128xbf16, #tpu.memory_space<vmem>>, vector<16x128xbf16>
    tpu.vector_store %arg9[%c0_24, %c0_25], %43 {strides = array<i32>} : memref<16x128xbf16, #tpu.memory_space<vmem>>, vector<16x128xbf16>,
    return
  }
  func.func @transform_0(%arg0: i32, %arg1: i32) -> (i32, i32, i32) {
    %c0_i32 = arith.constant 0 : i32
    %c0_i32_0 = arith.constant 0 : i32
    return %arg0, %arg1, %c0_i32 : i32, i32, i32
  }
  func.func @transform_1(%arg0: i32, %arg1: i32) -> (i32, i32) {
    %c0_i32 = arith.constant 0 : i32
    %c0_i32_0 = arith.constant 0 : i32
    %c0_i32_1 = arith.constant 0 : i32
    return %c0_i32, %c0_i32_0 : i32, i32
  }
  func.func @transform_2(%arg0: i32, %arg1: i32) -> (i32, i32) {
    %c0_i32 = arith.constant 0 : i32
    %c0_i32_0 = arith.constant 0 : i32
    %c0_i32_1 = arith.constant 0 : i32
    return %c0_i32, %c0_i32_0 : i32, i32
  }
  func.func @transform_3(%arg0: i32, %arg1: i32) -> (i32, i32) {
    %c0_i32 = arith.constant 0 : i32
    %c0_i32_0 = arith.constant 0 : i32
    %c0_i32_1 = arith.constant 0 : i32
    return %c0_i32, %c0_i32_0 : i32, i32
  }
  func.func @transform_4(%arg0: i32, %arg1: i32) -> (i32, i32) {
    %c0_i32 = arith.constant 0 : i32
    %c0_i32_0 = arith.constant 0 : i32
    %c0_i32_1 = arith.constant 0 : i32
    return %c0_i32, %c0_i32_0 : i32, i32
  }
  func.func @transform_5(%arg0: i32, %arg1: i32) -> (i32, i32, i32) {
    %c0_i32 = arith.constant 0 : i32
    %c0_i32_0 = arith.constant 0 : i32
    return %arg0, %arg1, %c0_i32 : i32, i32, i32
  }
}

</mosaic_0001>

<llo_original>
// kernel: temporal_block_forward.1
$region0: #{temporal_block_forward.1}
  #allocation0 [shape = 'u32[]', space=smem, size = 0x4, offset = 0x4, fixed_abs, tag = 'smem constant byte address 0x4 - core index']
  #allocation1 [shape = 'u32[144,128]{1,0:T(1,128)}', space=vmem, size = 0x12000, scoped, tag = 'internal scratch']
  #allocation2 [shape = 'bf16[16,128]{1,0:T(16,128)(2,1)}', space=vmem, size = 0x1000, scoped, tag = 'scratch operand']
  #allocation3 [shape = 'bf16[16,128]{1,0:T(16,128)(2,1)}', space=vmem, size = 0x1000, scoped, tag = 'scratch operand']
  %s0 = inlined_call_operand.vmem [shape: f32[2,16,128], index: 0, kind: input, shape index: {}]
  %s1 = inlined_call_operand.vmem [shape: bf16[384,256], index: 1, kind: input, shape index: {}]
  %s2 = inlined_call_operand.vmem [shape: f32[1,256], index: 2, kind: input, shape index: {}]
  %s3 = inlined_call_operand.vmem [shape: bf16[384,128], index: 3, kind: input, shape index: {}]
  %s4 = inlined_call_operand.vmem [shape: f32[1,128], index: 4, kind: input, shape index: {}]
  %s5 = inlined_call_operand.vmem [shape: f32[2,16,128], index: 5, kind: output, shape index: {}]
  %s6 = sld [smem:[#allocation0]]
  $region57: #{temporal_block_forward.1} parent=0
    _
  %s8 = ssub.s32 1, %s6
  %s9 = scalar_select 0, %s8, %s6
  loop: start=0, step=1, limit=4
  $region2: #{temporal_block_forward.1} parent=0 // loop_pre_header
    _
  $region3: #{temporal_block_forward.1} parent=0 // loop_header
    %s11 = sphi 0, %s15
    %p12 = scmp.ge.s32.totalorder %s11, 4
    %s18 = sphi 0, %s30
    %s19 = sphi 0, %s26
    %s20 = sphi 0, %s18
    %s21 = sphi 0, %s19
    %s22 = sphi 0, %s20
    %s23 = sphi 0, %s21
    %s35 = sphi 0, %s37
    %s38 = sphi 0, %s35
    %s39 = sphi 0, %s38
    %s55 = sphi 0, %s39
    %s59 = sphi 0, %s59
    %s61 = sphi 0, %s59
    %s62 = sphi 0, %s61
    %s76 = sphi 0, %s62
    %s80 = sphi 0, %s80
    %s82 = sphi 0, %s80
    %s83 = sphi 0, %s82
    %s97 = sphi 0, %s83
    %s101 = sphi 0, %s101
    %s103 = sphi 0, %s101
    %s104 = sphi 0, %s103
    %s118 = sphi 0, %s104
    %s122 = sphi 0, %s122
    %s124 = sphi 0, %s122
    %s125 = sphi 0, %s124
    %s139 = sphi 0, %s125
    %s147 = sphi 0, %s149
    %s150 = sphi 0, %s147
    %s151 = sphi 0, %s150
    %s167 = sphi 0, %s151
  $region4: #{temporal_block_forward.1} parent=0 // loop_header_branch
    %14 = sbr.rel (%p12) target = $region8
  $region5: #{temporal_block_forward.1} parent=0 // loop_body
    %s16 = ssub.s32 %s11, 1
    %s17 = ssub.s32 %s11, 2
    %s24 = sadd.s32 1, %s19
    %p25 = scmp.ge.s32.totalorder %s24, 1
    %s26 = scalar_select %p25, 0, %s24
    %s27 = sadd.s32 1, %s18
    %s28 = scalar_select %p25, %s27, %s18
    %p29 = scmp.ge.s32.totalorder %s28, 2
    %s30 = scalar_select %p29, 0, %s28
    %s31 = ssub.s32 %s18, %s30
    %s32 = ssub.s32 %s19, %s26
    %s33 = sor.u32 %s31, %s32
    %p34 = scmp.eq.s32.totalorder %s33, 0
    %s36 = sadd.s32 %s35, 1
    %s37 = scalar_select %p34, %s35, %s36
    %p40 = pneg %p34
    %p41 = scmp.eq.s32.totalorder %s11, 1
    %p42 = por %p40, %p41
    %p43 = scmp.ne.s32.totalorder %s35, %s38
    %p44 = scmp.eq.s32.totalorder %s11, 0
    %p45 = por %p43, %p44
    %p46 = scmp.ne.s32.totalorder %s35, %s38
    %p47 = scmp.eq.s32.totalorder %s16, 1
    %p48 = por %p46, %p47
    %p49 = scmp.ne.s32.totalorder %s38, %s39
    %p50 = scmp.eq.s32.totalorder %s16, 0
    %p51 = por %p49, %p50
    %p52 = scmp.ne.s32.totalorder %s38, %s39
    %p53 = scmp.eq.s32.totalorder %s17, 1
    %p54 = por %p52, %p53
    %p56 = scmp.ne.s32.totalorder %s39, %s55
    %p57 = scmp.eq.s32.totalorder %s17, 0
    %p58 = por %p56, %p57
    %s60 = sadd.s32 %s59, 1
    %p63 = scmp.eq.s32.totalorder %s11, 1
    %p64 = scmp.ne.s32.totalorder %s59, %s61
    %p65 = scmp.eq.s32.totalorder %s11, 0
    %p66 = por %p64, %p65
    %p67 = scmp.ne.s32.totalorder %s59, %s61
    %p68 = scmp.eq.s32.totalorder %s16, 1
    %p69 = por %p67, %p68
    %p70 = scmp.ne.s32.totalorder %s61, %s62
    %p71 = scmp.eq.s32.totalorder %s16, 0
    %p72 = por %p70, %p71
    %p73 = scmp.ne.s32.totalorder %s61, %s62
    %p74 = scmp.eq.s32.totalorder %s17, 1
    %p75 = por %p73, %p74
    %p77 = scmp.ne.s32.totalorder %s62, %s76
    %p78 = scmp.eq.s32.totalorder %s17, 0
    %p79 = por %p77, %p78
    %s81 = sadd.s32 %s80, 1
    %p84 = scmp.eq.s32.totalorder %s11, 1
    %p85 = scmp.ne.s32.totalorder %s80, %s82
    %p86 = scmp.eq.s32.totalorder %s11, 0
    %p87 = por %p85, %p86
    %p88 = scmp.ne.s32.totalorder %s80, %s82
    %p89 = scmp.eq.s32.totalorder %s16, 1
    %p90 = por %p88, %p89
    %p91 = scmp.ne.s32.totalorder %s82, %s83
    %p92 = scmp.eq.s32.totalorder %s16, 0
    %p93 = por %p91, %p92
    %p94 = scmp.ne.s32.totalorder %s82, %s83
    %p95 = scmp.eq.s32.totalorder %s17, 1
    %p96 = por %p94, %p95
    %p98 = scmp.ne.s32.totalorder %s83, %s97
    %p99 = scmp.eq.s32.totalorder %s17, 0
    %p100 = por %p98, %p99
    %s102 = sadd.s32 %s101, 1
    %p105 = scmp.eq.s32.totalorder %s11, 1
    %p106 = scmp.ne.s32.totalorder %s101, %s103
    %p107 = scmp.eq.s32.totalorder %s11, 0
    %p108 = por %p106, %p107
    %p109 = scmp.ne.s32.totalorder %s101, %s103
    %p110 = scmp.eq.s32.totalorder %s16, 1
    %p111 = por %p109, %p110
    %p112 = scmp.ne.s32.totalorder %s103, %s104
    %p113 = scmp.eq.s32.totalorder %s16, 0
    %p114 = por %p112, %p113
    %p115 = scmp.ne.s32.totalorder %s103, %s104
    %p116 = scmp.eq.s32.totalorder %s17, 1
    %p117 = por %p115, %p116
    %p119 = scmp.ne.s32.totalorder %s104, %s118
    %p120 = scmp.eq.s32.totalorder %s17, 0
    %p121 = por %p119, %p120
    %s123 = sadd.s32 %s122, 1
    %p126 = scmp.eq.s32.totalorder %s11, 1
    %p127 = scmp.ne.s32.totalorder %s122, %s124
    %p128 = scmp.eq.s32.totalorder %s11, 0
    %p129 = por %p127, %p128
    %p130 = scmp.ne.s32.totalorder %s122, %s124
    %p131 = scmp.eq.s32.totalorder %s16, 1
    %p132 = por %p130, %p131
    %p133 = scmp.ne.s32.totalorder %s124, %s125
    %p134 = scmp.eq.s32.totalorder %s16, 0
    %p135 = por %p133, %p134
    %p136 = scmp.ne.s32.totalorder %s124, %s125
    %p137 = scmp.eq.s32.totalorder %s17, 1
    %p138 = por %p136, %p137
    %p140 = scmp.ne.s32.totalorder %s125, %s139
    %p141 = scmp.eq.s32.totalorder %s17, 0
    %p142 = por %p140, %p141
    %s143 = ssub.s32 %s18, %s30
    %s144 = ssub.s32 %s19, %s26
    %s145 = sor.u32 %s143, %s144
    %p146 = scmp.eq.s32.totalorder %s145, 0
    %s148 = sadd.s32 %s147, 1
    %s149 = scalar_select %p146, %s147, %s148
    %p152 = pneg %p146
    %p153 = scmp.eq.s32.totalorder %s11, 1
    %p154 = por %p152, %p153
    %p155 = scmp.ne.s32.totalorder %s147, %s150
    %p156 = scmp.eq.s32.totalorder %s11, 0
    %p157 = por %p155, %p156
    %p158 = scmp.ne.s32.totalorder %s147, %s150
    %p159 = scmp.eq.s32.totalorder %s16, 1
    %p160 = por %p158, %p159
    %p161 = scmp.ne.s32.totalorder %s150, %s151
    %p162 = scmp.eq.s32.totalorder %s16, 0
    %p163 = por %p161, %p162
    %p164 = scmp.ne.s32.totalorder %s150, %s151
    %p165 = scmp.eq.s32.totalorder %s17, 1
    %p166 = por %p164, %p165
    %p168 = scmp.ne.s32.totalorder %s151, %s167
    %p169 = scmp.eq.s32.totalorder %s17, 0
    %p170 = por %p168, %p169
    %p171 = scmp.le.s32.totalorder 1, %s11
    %p172 = scmp.lt.s32.totalorder %s11, 3
    %p173 = pnand %p171, %p172
    %p174 = pneg %p173
    // Predicated region
    $region9: #{temporal_block_forward.1} parent=5 // pred_check
      _
    $region10: #{temporal_block_forward.1} parent=5 // pred_check_branch
      %176 = sbr.rel (%p173) target = $region12
    $region11: #{temporal_block_forward.1} parent=5 // pred_region
      %s177 = ssub.s32 %s11, 1
      // Predicated region
      $region13: #{temporal_block_forward.1} parent=11 // pred_check
        %p178 = pneg %p72
      $region14: #{temporal_block_forward.1} parent=11 // pred_check_branch
        %180 = sbr.rel (%p178) target = $region16
      $region15: #{temporal_block_forward.1} parent=11 // pred_region
        _
      $region16: #{temporal_block_forward.1} parent=11 // pred_fallthru
        _
      // Predicated region
      $region17: #{temporal_block_forward.1} parent=11 // pred_check
        %p181 = pneg %p93
      $region18: #{temporal_block_forward.1} parent=11 // pred_check_branch
        %183 = sbr.rel (%p181) target = $region20
      $region19: #{temporal_block_forward.1} parent=11 // pred_region
        _
      $region20: #{temporal_block_forward.1} parent=11 // pred_fallthru
        _
      // Predicated region
      $region21: #{temporal_block_forward.1} parent=11 // pred_check
        %p184 = pneg %p114
      $region22: #{temporal_block_forward.1} parent=11 // pred_check_branch
        %186 = sbr.rel (%p184) target = $region24
      $region23: #{temporal_block_forward.1} parent=11 // pred_region
        _
      $region24: #{temporal_block_forward.1} parent=11 // pred_fallthru
        _
      // Predicated region
      $region25: #{temporal_block_forward.1} parent=11 // pred_check
        %p187 = pneg %p135
      $region26: #{temporal_block_forward.1} parent=11 // pred_check_branch
        %189 = sbr.rel (%p187) target = $region28
      $region27: #{temporal_block_forward.1} parent=11 // pred_region
        _
      $region28: #{temporal_block_forward.1} parent=11 // pred_fallthru
        _
    $region12: #{temporal_block_forward.1} parent=5 // pred_fallthru
      _
    %p190 = scmp.lt.s32.totalorder %s11, 2
    // Predicated region
    $region29: #{temporal_block_forward.1} parent=5 // pred_check
      %p191 = pneg %p190
    $region30: #{temporal_block_forward.1} parent=5 // pred_check_branch
      %193 = sbr.rel (%p191) target = $region32
    $region31: #{temporal_block_forward.1} parent=5 // pred_region
      // Predicated region
      $region33: #{temporal_block_forward.1} parent=31 // pred_check
        %p194 = pneg %p45
      $region34: #{temporal_block_forward.1} parent=31 // pred_check_branch
        %196 = sbr.rel (%p194) target = $region36
      $region35: #{temporal_block_forward.1} parent=31 // pred_region
        %s197 = smul.u32 2, %s19
        %p198 = scmp.lt.s32.totalorder %s18, 1
        %s199 = scalar_select %p198, %s18, 1
        %p200 = scmp.lt.s32.totalorder %s197, 1
        %s201 = scalar_select %p200, %s197, 1
        %s202 = smul.addr %s199, 2
        %s203 = sadd.s32 %s201, %s202
        %s204 = smul.addr %s203, 8
        %s205 = scalar_lea.vmem %s0, %s204
        %s206 = smul.u32 2, %s19
      $region36: #{temporal_block_forward.1} parent=31 // pred_fallthru
        _
    $region32: #{temporal_block_forward.1} parent=5 // pred_fallthru
      _
    %p207 = scmp.le.s32.totalorder 1, %s11
    %p208 = scmp.lt.s32.totalorder %s11, 3
    %p209 = pnand %p207, %p208
    %p210 = pneg %p209
    // Predicated region
    $region37: #{temporal_block_forward.1} parent=5 // pred_check
      _
    $region38: #{temporal_block_forward.1} parent=5 // pred_check_branch
      %212 = sbr.rel (%p209) target = $region40
    $region39: #{temporal_block_forward.1} parent=5 // pred_region
      %s213 = ssub.s32 %s11, 1
      %s214 = smul.u32 2, %s21
      %p215 = scmp.lt.s32.totalorder %s20, 1
      %s216 = scalar_select %p215, %s20, 1
      %p217 = scmp.lt.s32.totalorder %s214, 1
      %s218 = scalar_select %p217, %s214, 1
      %s219 = smul.addr %s216, 2
      %s220 = sadd.s32 %s218, %s219
      %s221 = smul.addr %s220, 8
      %s222 = scalar_lea.vmem %s0, %s221
      %p223 = pneg %p51
      %p224 = pneg %p48
      %p225 = pneg %p72
      %p226 = pneg %p69
      %p227 = pneg %p93
      %p228 = pneg %p90
      %p229 = pneg %p114
      %p230 = pneg %p111
      %p231 = pneg %p135
      %p232 = pneg %p132
      %p233 = pneg %p163
      %p234 = pneg %p160
      %s235 = smul.u32 2, %s21
      %p236 = scmp.lt.s32.totalorder %s20, 1
      %s237 = scalar_select %p236, %s20, 1
      %p238 = scmp.lt.s32.totalorder %s235, 1
      %s239 = scalar_select %p238, %s235, 1
      %s240 = smul.addr %s237, 2
      %s241 = sadd.s32 %s239, %s240
      %s242 = smul.addr %s241, 8
      %s243 = scalar_lea.vmem %s5, %s242
      %s244 = smul.u32 2, %s21
      %p245 = scmp.lt.s32.totalorder %s20, 1
      %s246 = scalar_select %p245, %s20, 1
      %p247 = scmp.lt.s32.totalorder %s244, 1
      %s248 = scalar_select %p247, %s244, 1
      %s249 = smul.addr %s246, 2
      %s250 = sadd.s32 %s248, %s249
      %s251 = smul.addr %s250, 8
      %s252 = scalar_lea.vmem %s0, %s251
      %s253 = smul.u32 2, %s21
      %s254 = smul.u32 2, %s21
      %p255 = scmp.lt.s32.totalorder %s20, 1
      %s256 = scalar_select %p255, %s20, 1
      %p257 = scmp.lt.s32.totalorder %s254, 1
      %s258 = scalar_select %p257, %s254, 1
      %s259 = smul.addr %s256, 2
      %s260 = sadd.s32 %s258, %s259
      %s261 = smul.addr %s260, 8
      %s262 = scalar_lea.vmem %s5, %s261
      %s263 = smul.u32 2, %s21
      %p265 = scmp.eq.s32.totalorder %s21, 0
      // Predicated region
      $region41: #{temporal_block_forward.1} parent=39 // pred_check
        %p266 = pneg %p265
      $region42: #{temporal_block_forward.1} parent=39 // pred_check_branch
        %268 = sbr.rel (%p266) target = $region44
      $region43: #{temporal_block_forward.1} parent=39 // pred_region
        %269 = vst [vmem:[#allocation2] sm:$0xff] 0
        %270 = vst [vmem:[#allocation3] sm:$0xff] 0
      $region44: #{temporal_block_forward.1} parent=39 // pred_fallthru
        _
      %v271 = vld [vmem:[%s252] sm:$0xff]
      %v272 = vld [vmem:[%s252 + $0x8] sm:$0xff]
      %v273 = vpack.c.bf16 %v272, %v271
      %v274 = vld [vmem:[#allocation2] sm:$0xff]
      %vm277 = vcmask 1046528
      %v278 = vrot.slane %v274, 1
      %v279 = vrot.slane %v273, 1
      %v280 = vsel %vm277, %v278, %v279
      %v281 = vrot.slane %v273, 2
      %v282 = vld [vmem:[%s1] sm:$0xff]
      %v283 = vld [vmem:[%s1 + $0x8] sm:$0xff]
      %v284 = vld [vmem:[%s1 + $0x10] sm:$0xff]
      %v285 = vld [vmem:[%s1 + $0x18] sm:$0xff]
      %v286 = vld [vmem:[%s1 + $0x20] sm:$0xff]
      %v287 = vld [vmem:[%s1 + $0x28] sm:$0xff]
      %v288 = vld [vmem:[%s1 + $0x30] sm:$0xff]
      %v289 = vld [vmem:[%s1 + $0x38] sm:$0xff]
      %v290 = vld [vmem:[%s1 + $0x40] sm:$0xff]
      %v291 = vld [vmem:[%s1 + $0x48] sm:$0xff]
      %v292 = vld [vmem:[%s1 + $0x50] sm:$0xff]
      %v293 = vld [vmem:[%s1 + $0x58] sm:$0xff]
      %v294 = vld [vmem:[%s1 + $0x60] sm:$0xff]
      %v295 = vld [vmem:[%s1 + $0x68] sm:$0xff]
      %v296 = vld [vmem:[%s1 + $0x70] sm:$0xff]
      %v297 = vld [vmem:[%s1 + $0x78] sm:$0xff]
      %v298 = vld [vmem:[%s1 + $0x80] sm:$0xff]
      %v299 = vld [vmem:[%s1 + $0x88] sm:$0xff]
      %v300 = vld [vmem:[%s1 + $0x90] sm:$0xff]
      %v301 = vld [vmem:[%s1 + $0x98] sm:$0xff]
      %v302 = vld [vmem:[%s1 + $0xa0] sm:$0xff]
      %v303 = vld [vmem:[%s1 + $0xa8] sm:$0xff]
      %v304 = vld [vmem:[%s1 + $0xb0] sm:$0xff]
      %v305 = vld [vmem:[%s1 + $0xb8] sm:$0xff]
      %v306 = vld [vmem:[%s1 + $0xc0] sm:$0xff]
      %v307 = vld [vmem:[%s1 + $0xc8] sm:$0xff]
      %v308 = vld [vmem:[%s1 + $0xd0] sm:$0xff]
      %v309 = vld [vmem:[%s1 + $0xd8] sm:$0xff]
      %v310 = vld [vmem:[%s1 + $0xe0] sm:$0xff]
      %v311 = vld [vmem:[%s1 + $0xe8] sm:$0xff]
      %v312 = vld [vmem:[%s1 + $0xf0] sm:$0xff]
      %v313 = vld [vmem:[%s1 + $0xf8] sm:$0xff]
      %v314 = vld [vmem:[%s1 + $0x100] sm:$0xff]
      %v315 = vld [vmem:[%s1 + $0x108] sm:$0xff]
      %v316 = vld [vmem:[%s1 + $0x110] sm:$0xff]
      %v317 = vld [vmem:[%s1 + $0x118] sm:$0xff]
      %v318 = vld [vmem:[%s1 + $0x120] sm:$0xff]
      %v319 = vld [vmem:[%s1 + $0x128] sm:$0xff]
      %v320 = vld [vmem:[%s1 + $0x130] sm:$0xff]
      %v321 = vld [vmem:[%s1 + $0x138] sm:$0xff]
      %v322 = vld [vmem:[%s1 + $0x140] sm:$0xff]
      %v323 = vld [vmem:[%s1 + $0x148] sm:$0xff]
      %v324 = vld [vmem:[%s1 + $0x150] sm:$0xff]
      %v325 = vld [vmem:[%s1 + $0x158] sm:$0xff]
      %v326 = vld [vmem:[%s1 + $0x160] sm:$0xff]
      %v327 = vld [vmem:[%s1 + $0x168] sm:$0xff]
      %v328 = vld [vmem:[%s1 + $0x170] sm:$0xff]
      %v329 = vld [vmem:[%s1 + $0x178] sm:$0xff]
      %v330 = vld [vmem:[%s2] sm:$0x3]
      %v332 = vlaneseq
      %v333 = vshrl.u32 %v332, 7
      %v334 = vsub.s32 0, %v333
      %v335 = vrot.slane %v330, %v334
      %v336 = vlaneseq
      %v337 = vshrl.u32 %v336, 7
      %v338 = vsub.s32 1, %v337
      %v339 = vrot.slane %v330, %v338
      %vm342 = vcmask 1041408
      %v343 = vrot.slane %v274, 6
      %v344 = vrot.slane %v273, 6
      %v345 = vsel %vm342, %v343, %v344
      %v346 = vrot.slane %v280, 6
      %v347 = vrot.slane %v279, 6
      %v348 = vsel %vm342, %v346, %v347
      %v349 = vrot.slane %v281, 6
      %v350 = vsel %vm342, %v349, %v349
      %v402 = vunpack.c.l.b16 %v282
      %v403 = vunpack.c.h.b16 %v282
      %v404 = vunpack.c.l.b16 %v283
      %v405 = vunpack.c.h.b16 %v283
      %v406 = vunpack.c.l.b16 %v284
      %v407 = vunpack.c.h.b16 %v284
      %v408 = vunpack.c.l.b16 %v285
      %v409 = vunpack.c.h.b16 %v285
      %v410 = vunpack.c.l.b16 %v286
      %v411 = vunpack.c.h.b16 %v286
      %v412 = vunpack.c.l.b16 %v287
      %v413 = vunpack.c.h.b16 %v287
      %v414 = vunpack.c.l.b16 %v288
      %v415 = vunpack.c.h.b16 %v288
      %v416 = vunpack.c.l.b16 %v289
      %v417 = vunpack.c.h.b16 %v289
      %v418 = vunpack.c.l.b16 %v290
      %v419 = vunpack.c.h.b16 %v290
      %v420 = vunpack.c.l.b16 %v291
      %v421 = vunpack.c.h.b16 %v291
      %v422 = vunpack.c.l.b16 %v292
      %v423 = vunpack.c.h.b16 %v292
      %v424 = vunpack.c.l.b16 %v293
      %v425 = vunpack.c.h.b16 %v293
      %v426 = vunpack.c.l.b16 %v294
      %v427 = vunpack.c.h.b16 %v294
      %v428 = vunpack.c.l.b16 %v295
      %v429 = vunpack.c.h.b16 %v295
      %v430 = vunpack.c.l.b16 %v296
      %v431 = vunpack.c.h.b16 %v296
      %v432 = vunpack.c.l.b16 %v297
      %v433 = vunpack.c.h.b16 %v297
      %v434 = vunpack.c.l.b16 %v298
      %v435 = vunpack.c.h.b16 %v298
      %v436 = vunpack.c.l.b16 %v299
      %v437 = vunpack.c.h.b16 %v299
      %v438 = vunpack.c.l.b16 %v300
      %v439 = vunpack.c.h.b16 %v300
      %v440 = vunpack.c.l.b16 %v301
      %v441 = vunpack.c.h.b16 %v301
      %v442 = vunpack.c.l.b16 %v302
      %v443 = vunpack.c.h.b16 %v302
      %v444 = vunpack.c.l.b16 %v303
      %v445 = vunpack.c.h.b16 %v303
      %v446 = vunpack.c.l.b16 %v304
      %v447 = vunpack.c.h.b16 %v304
      %v448 = vunpack.c.l.b16 %v305
      %v449 = vunpack.c.h.b16 %v305
      %v450 = vunpack.c.l.b16 %v306
      %v451 = vunpack.c.h.b16 %v306
      %v452 = vunpack.c.l.b16 %v307
      %v453 = vunpack.c.h.b16 %v307
      %v454 = vunpack.c.l.b16 %v308
      %v455 = vunpack.c.h.b16 %v308
      %v456 = vunpack.c.l.b16 %v309
      %v457 = vunpack.c.h.b16 %v309
      %v458 = vunpack.c.l.b16 %v310
      %v459 = vunpack.c.h.b16 %v310
      %v460 = vunpack.c.l.b16 %v311
      %v461 = vunpack.c.h.b16 %v311
      %v462 = vunpack.c.l.b16 %v312
      %v463 = vunpack.c.h.b16 %v312
      %v464 = vunpack.c.l.b16 %v313
      %v465 = vunpack.c.h.b16 %v313
      %v466 = vunpack.c.l.b16 %v314
      %v467 = vunpack.c.h.b16 %v314
      %v468 = vunpack.c.l.b16 %v315
      %v469 = vunpack.c.h.b16 %v315
      %v470 = vunpack.c.l.b16 %v316
      %v471 = vunpack.c.h.b16 %v316
      %v472 = vunpack.c.l.b16 %v317
      %v473 = vunpack.c.h.b16 %v317
      %v474 = vunpack.c.l.b16 %v318
      %v475 = vunpack.c.h.b16 %v318
      %v476 = vunpack.c.l.b16 %v319
      %v477 = vunpack.c.h.b16 %v319
      %v478 = vunpack.c.l.b16 %v320
      %v479 = vunpack.c.h.b16 %v320
      %v480 = vunpack.c.l.b16 %v321
      %v481 = vunpack.c.h.b16 %v321
      %v482 = vunpack.c.l.b16 %v322
      %v483 = vunpack.c.h.b16 %v322
      %v484 = vunpack.c.l.b16 %v323
      %v485 = vunpack.c.h.b16 %v323
      %v486 = vunpack.c.l.b16 %v324
      %v487 = vunpack.c.h.b16 %v324
      %v488 = vunpack.c.l.b16 %v325
      %v489 = vunpack.c.h.b16 %v325
      %v490 = vunpack.c.l.b16 %v326
      %v491 = vunpack.c.h.b16 %v326
      %v492 = vunpack.c.l.b16 %v327
      %v493 = vunpack.c.h.b16 %v327
      %v494 = vunpack.c.l.b16 %v328
      %v495 = vunpack.c.h.b16 %v328
      %v496 = vunpack.c.l.b16 %v329
      %v497 = vunpack.c.h.b16 %v329
      %v498 = vpack.c.b16 %v404, %v402
      %v499 = vpack.c.b16 %v405, %v403
      %v500 = vpack.c.b16 %v408, %v406
      %v501 = vpack.c.b16 %v409, %v407
      %v502 = vpack.c.b16 %v412, %v410
      %v503 = vpack.c.b16 %v413, %v411
      %v504 = vpack.c.b16 %v416, %v414
      %v505 = vpack.c.b16 %v417, %v415
      %v506 = vpack.c.b16 %v420, %v418
      %v507 = vpack.c.b16 %v421, %v419
      %v508 = vpack.c.b16 %v424, %v422
      %v509 = vpack.c.b16 %v425, %v423
      %v510 = vpack.c.b16 %v428, %v426
      %v511 = vpack.c.b16 %v429, %v427
      %v512 = vpack.c.b16 %v432, %v430
      %v513 = vpack.c.b16 %v433, %v431
      %v514 = vpack.c.b16 %v436, %v434
      %v515 = vpack.c.b16 %v437, %v435
      %v516 = vpack.c.b16 %v440, %v438
      %v517 = vpack.c.b16 %v441, %v439
      %v518 = vpack.c.b16 %v444, %v442
      %v519 = vpack.c.b16 %v445, %v443
      %v520 = vpack.c.b16 %v448, %v446
      %v521 = vpack.c.b16 %v449, %v447
      %v522 = vpack.c.b16 %v452, %v450
      %v523 = vpack.c.b16 %v453, %v451
      %v524 = vpack.c.b16 %v456, %v454
      %v525 = vpack.c.b16 %v457, %v455
      %v526 = vpack.c.b16 %v460, %v458
      %v527 = vpack.c.b16 %v461, %v459
      %v528 = vpack.c.b16 %v464, %v462
      %v529 = vpack.c.b16 %v465, %v463
      %v530 = vpack.c.b16 %v468, %v466
      %v531 = vpack.c.b16 %v469, %v467
      %v532 = vpack.c.b16 %v472, %v470
      %v533 = vpack.c.b16 %v473, %v471
      %v534 = vpack.c.b16 %v476, %v474
      %v535 = vpack.c.b16 %v477, %v475
      %v536 = vpack.c.b16 %v480, %v478
      %v537 = vpack.c.b16 %v481, %v479
      %v538 = vpack.c.b16 %v484, %v482
      %v539 = vpack.c.b16 %v485, %v483
      %v540 = vpack.c.b16 %v488, %v486
      %v541 = vpack.c.b16 %v489, %v487
      %v542 = vpack.c.b16 %v492, %v490
      %v543 = vpack.c.b16 %v493, %v491
      %v544 = vpack.c.b16 %v496, %v494
      %v545 = vpack.c.b16 %v497, %v495
      %594 = vmatprep.subr.bf16.mxu0 %v499
      %595 = vmatpush1.bf16.msra.mxu0 %v498
      %596 = vmatprep.subr.bf16.mxu0 %v501
      %597 = vmatpush1.bf16.msra.mxu0 %v500
      %598 = vmatprep.subr.bf16.mxu0 %v503
      %599 = vmatpush1.bf16.msra.mxu0 %v502
      %600 = vmatprep.subr.bf16.mxu0 %v505
      %601 = vmatpush1.bf16.msra.mxu0 %v504
      %602 = vmatprep.subr.bf16.mxu0 %v507
      %603 = vmatpush1.bf16.msra.mxu0 %v506
      %604 = vmatprep.subr.bf16.mxu0 %v509
      %605 = vmatpush1.bf16.msra.mxu0 %v508
      %606 = vmatprep.subr.bf16.mxu0 %v511
      %607 = vmatpush1.bf16.msra.mxu0 %v510
      %608 = vmatprep.subr.bf16.mxu0 %v513
      %609 = vmatpush1.bf16.msra.mxu0 %v512
      %610 = vmatprep.subr.bf16.mxu0 %v515
      %611 = vmatpush1.bf16.msra.mxu0 %v514
      %612 = vmatprep.subr.bf16.mxu0 %v517
      %613 = vmatpush1.bf16.msra.mxu0 %v516
      %614 = vmatprep.subr.bf16.mxu0 %v519
      %615 = vmatpush1.bf16.msra.mxu0 %v518
      %616 = vmatprep.subr.bf16.mxu0 %v521
      %617 = vmatpush1.bf16.msra.mxu0 %v520
      %618 = vmatprep.subr.bf16.mxu0 %v523
      %619 = vmatpush1.bf16.msra.mxu0 %v522
      %620 = vmatprep.subr.bf16.mxu0 %v525
      %621 = vmatpush1.bf16.msra.mxu0 %v524
      %622 = vmatprep.subr.bf16.mxu0 %v527
      %623 = vmatpush1.bf16.msra.mxu0 %v526
      %624 = vmatprep.subr.bf16.mxu0 %v529
      %625 = vmatpush1.bf16.msra.mxu0 %v528
      %626 = vmatprep.mubr.bf16.mxu0 %v348
      %627 = vmatmul.mubr.bf16.gmra.mrb[0].mxu0 %v345
      %v628 = vpop.f32.mrb[0].mxu0
      %v629 = vadd.f32 %v335, %v628
      %v630 = vpop.f32.mrb[0].mxu0
      %v631 = vadd.f32 %v339, %v630
      %v632 = vpop.f32.mrb[0].mxu0
      %v633 = vadd.f32 %v335, %v632
      %v634 = vpop.f32.mrb[0].mxu0
      %v635 = vadd.f32 %v339, %v634
      %636 = vdwg.mxu0
      %637 = vmatprep.subr.bf16.mxu0 %v531
      %638 = vmatpush1.bf16.msra.mxu0 %v530
      %639 = vmatprep.subr.bf16.mxu0 %v533
      %640 = vmatpush1.bf16.msra.mxu0 %v532
      %641 = vmatprep.subr.bf16.mxu0 %v535
      %642 = vmatpush1.bf16.msra.mxu0 %v534
      %643 = vmatprep.subr.bf16.mxu0 %v537
      %644 = vmatpush1.bf16.msra.mxu0 %v536
      %645 = vmatprep.subr.bf16.mxu0 %v539
      %646 = vmatpush1.bf16.msra.mxu0 %v538
      %647 = vmatprep.subr.bf16.mxu0 %v541
      %648 = vmatpush1.bf16.msra.mxu0 %v540
      %649 = vmatprep.subr.bf16.mxu0 %v543
      %650 = vmatpush1.bf16.msra.mxu0 %v542
      %651 = vmatprep.subr.bf16.mxu0 %v545
      %652 = vmatpush1.bf16.msra.mxu0 %v544
      %653 = vmatprep.subr.bf16.mxu0 0
      %654 = vmatpush1.bf16.msra.mxu0 0
      %655 = vmatprep.subr.bf16.mxu0 0
      %656 = vmatpush1.bf16.msra.mxu0 0
      %657 = vmatprep.subr.bf16.mxu0 0
      %658 = vmatpush1.bf16.msra.mxu0 0
      %659 = vmatprep.subr.bf16.mxu0 0
      %660 = vmatpush1.bf16.msra.mxu0 0
      %661 = vmatprep.subr.bf16.mxu0 0
      %662 = vmatpush1.bf16.msra.mxu0 0
      %663 = vmatprep.subr.bf16.mxu0 0
      %664 = vmatpush1.bf16.msra.mxu0 0
      %665 = vmatprep.subr.bf16.mxu0 0
      %666 = vmatpush1.bf16.msra.mxu0 0
      %667 = vmatprep.subr.bf16.mxu0 0
      %668 = vmatpush1.bf16.msra.mxu0 0
      %669 = vmatprep.mubr.bf16.mxu0 0
      %670 = vmatmul.mubr.bf16.gmra.mrb[0].mxu0 %v350
      %v671 = vpop.f32.mrb[0].mxu0
      %v672 = vadd.f32 %v629, %v671
      %v673 = vpop.f32.mrb[0].mxu0
      %v674 = vadd.f32 %v631, %v673
      %v675 = vpop.f32.mrb[0].mxu0
      %v676 = vadd.f32 %v633, %v675
      %v677 = vpop.f32.mrb[0].mxu0
      %v678 = vadd.f32 %v635, %v677
      %679 = vdwg.mxu0
      %v680 = vmax.f32 %v672, 0.0
      %v681 = vmax.f32 %v676, 0.0
      %v682 = vpack.c.bf16 %v681, %v680
      %v683 = vld [vmem:[#allocation3] sm:$0xff]
      %v686 = vrot.slane %v683, 1
      %v687 = vrot.slane %v682, 1
      %v688 = vsel %vm277, %v686, %v687
      %v689 = vrot.slane %v682, 2
      %v690 = vld [vmem:[%s3] sm:$0xf]
      %v691 = vld [vmem:[%s3 + $0x4] sm:$0xf]
      %v692 = vld [vmem:[%s3 + $0x8] sm:$0xf]
      %v693 = vld [vmem:[%s3 + $0xc] sm:$0xf]
      %v694 = vld [vmem:[%s3 + $0x10] sm:$0xf]
      %v695 = vld [vmem:[%s3 + $0x14] sm:$0xf]
      %v696 = vld [vmem:[%s3 + $0x18] sm:$0xf]
      %v697 = vld [vmem:[%s3 + $0x1c] sm:$0xf]
      %v698 = vld [vmem:[%s3 + $0x20] sm:$0xf]
      %v699 = vld [vmem:[%s3 + $0x24] sm:$0xf]
      %v700 = vld [vmem:[%s3 + $0x28] sm:$0xf]
      %v701 = vld [vmem:[%s3 + $0x2c] sm:$0xf]
      %v702 = vld [vmem:[%s3 + $0x30] sm:$0xf]
      %v703 = vld [vmem:[%s3 + $0x34] sm:$0xf]
      %v704 = vld [vmem:[%s3 + $0x38] sm:$0xf]
      %v705 = vld [vmem:[%s3 + $0x3c] sm:$0xf]
      %v706 = vld [vmem:[%s3 + $0x40] sm:$0xf]
      %v707 = vld [vmem:[%s3 + $0x44] sm:$0xf]
      %v708 = vld [vmem:[%s3 + $0x48] sm:$0xf]
      %v709 = vld [vmem:[%s3 + $0x4c] sm:$0xf]
      %v710 = vld [vmem:[%s3 + $0x50] sm:$0xf]
      %v711 = vld [vmem:[%s3 + $0x54] sm:$0xf]
      %v712 = vld [vmem:[%s3 + $0x58] sm:$0xf]
      %v713 = vld [vmem:[%s3 + $0x5c] sm:$0xf]
      %v714 = vld [vmem:[%s3 + $0x60] sm:$0xf]
      %v715 = vld [vmem:[%s3 + $0x64] sm:$0xf]
      %v716 = vld [vmem:[%s3 + $0x68] sm:$0xf]
      %v717 = vld [vmem:[%s3 + $0x6c] sm:$0xf]
      %v718 = vld [vmem:[%s3 + $0x70] sm:$0xf]
      %v719 = vld [vmem:[%s3 + $0x74] sm:$0xf]
      %v720 = vld [vmem:[%s3 + $0x78] sm:$0xf]
      %v721 = vld [vmem:[%s3 + $0x7c] sm:$0xf]
      %v722 = vld [vmem:[%s3 + $0x80] sm:$0xf]
      %v723 = vld [vmem:[%s3 + $0x84] sm:$0xf]
      %v724 = vld [vmem:[%s3 + $0x88] sm:$0xf]
      %v725 = vld [vmem:[%s3 + $0x8c] sm:$0xf]
      %v726 = vld [vmem:[%s3 + $0x90] sm:$0xf]
      %v727 = vld [vmem:[%s3 + $0x94] sm:$0xf]
      %v728 = vld [vmem:[%s3 + $0x98] sm:$0xf]
      %v729 = vld [vmem:[%s3 + $0x9c] sm:$0xf]
      %v730 = vld [vmem:[%s3 + $0xa0] sm:$0xf]
      %v731 = vld [vmem:[%s3 + $0xa4] sm:$0xf]
      %v732 = vld [vmem:[%s3 + $0xa8] sm:$0xf]
      %v733 = vld [vmem:[%s3 + $0xac] sm:$0xf]
      %v734 = vld [vmem:[%s3 + $0xb0] sm:$0xf]
      %v735 = vld [vmem:[%s3 + $0xb4] sm:$0xf]
      %v736 = vld [vmem:[%s3 + $0xb8] sm:$0xf]
      %v737 = vld [vmem:[%s3 + $0xbc] sm:$0xf]
      %v738 = vld [vmem:[%s4] sm:$0x1]
      %v740 = vlaneseq
      %v741 = vshrl.u32 %v740, 7
      %v742 = vsub.s32 0, %v741
      %v743 = vrot.slane %v738, %v742
      %v745 = vrot.slane %v683, 6
      %v746 = vrot.slane %v682, 6
      %v747 = vsel %vm342, %v745, %v746
      %v748 = vrot.slane %v688, 6
      %v749 = vrot.slane %v687, 6
      %v750 = vsel %vm342, %v748, %v749
      %v751 = vrot.slane %v689, 6
      %v752 = vsel %vm342, %v751, %v751
      %v804 = vunpack.c.l.b16 %v690
      %v805 = vunpack.c.l.b16 %v691
      %v806 = vunpack.c.l.b16 %v692
      %v807 = vunpack.c.l.b16 %v693
      %v808 = vunpack.c.l.b16 %v694
      %v809 = vunpack.c.l.b16 %v695
      %v810 = vunpack.c.l.b16 %v696
      %v811 = vunpack.c.l.b16 %v697
      %v812 = vunpack.c.l.b16 %v698
      %v813 = vunpack.c.l.b16 %v699
      %v814 = vunpack.c.l.b16 %v700
      %v815 = vunpack.c.l.b16 %v701
      %v816 = vunpack.c.l.b16 %v702
      %v817 = vunpack.c.l.b16 %v703
      %v818 = vunpack.c.l.b16 %v704
      %v819 = vunpack.c.l.b16 %v705
      %v820 = vunpack.c.l.b16 %v706
      %v821 = vunpack.c.l.b16 %v707
      %v822 = vunpack.c.l.b16 %v708
      %v823 = vunpack.c.l.b16 %v709
      %v824 = vunpack.c.l.b16 %v710
      %v825 = vunpack.c.l.b16 %v711
      %v826 = vunpack.c.l.b16 %v712
      %v827 = vunpack.c.l.b16 %v713
      %v828 = vunpack.c.l.b16 %v714
      %v829 = vunpack.c.l.b16 %v715
      %v830 = vunpack.c.l.b16 %v716
      %v831 = vunpack.c.l.b16 %v717
      %v832 = vunpack.c.l.b16 %v718
      %v833 = vunpack.c.l.b16 %v719
      %v834 = vunpack.c.l.b16 %v720
      %v835 = vunpack.c.l.b16 %v721
      %v836 = vunpack.c.l.b16 %v722
      %v837 = vunpack.c.l.b16 %v723
      %v838 = vunpack.c.l.b16 %v724
      %v839 = vunpack.c.l.b16 %v725
      %v840 = vunpack.c.l.b16 %v726
      %v841 = vunpack.c.l.b16 %v727
      %v842 = vunpack.c.l.b16 %v728
      %v843 = vunpack.c.l.b16 %v729
      %v844 = vunpack.c.l.b16 %v730
      %v845 = vunpack.c.l.b16 %v731
      %v846 = vunpack.c.l.b16 %v732
      %v847 = vunpack.c.l.b16 %v733
      %v848 = vunpack.c.l.b16 %v734
      %v849 = vunpack.c.l.b16 %v735
      %v850 = vunpack.c.l.b16 %v736
      %v851 = vunpack.c.l.b16 %v737
      %v852 = vpack.c.b16 %v805, %v804
      %v853 = vpack.c.b16 %v807, %v806
      %v854 = vpack.c.b16 %v809, %v808
      %v855 = vpack.c.b16 %v811, %v810
      %v856 = vpack.c.b16 %v813, %v812
      %v857 = vpack.c.b16 %v815, %v814
      %v858 = vpack.c.b16 %v817, %v816
      %v859 = vpack.c.b16 %v819, %v818
      %v860 = vpack.c.b16 %v821, %v820
      %v861 = vpack.c.b16 %v823, %v822
      %v862 = vpack.c.b16 %v825, %v824
      %v863 = vpack.c.b16 %v827, %v826
      %v864 = vpack.c.b16 %v829, %v828
      %v865 = vpack.c.b16 %v831, %v830
      %v866 = vpack.c.b16 %v833, %v832
      %v867 = vpack.c.b16 %v835, %v834
      %v868 = vpack.c.b16 %v837, %v836
      %v869 = vpack.c.b16 %v839, %v838
      %v870 = vpack.c.b16 %v841, %v840
      %v871 = vpack.c.b16 %v843, %v842
      %v872 = vpack.c.b16 %v845, %v844
      %v873 = vpack.c.b16 %v847, %v846
      %v874 = vpack.c.b16 %v849, %v848
      %v875 = vpack.c.b16 %v851, %v850
      %900 = vmatprep.subr.bf16.mxu0 0
      %901 = vmatpush1.bf16.msra.mxu0 %v852
      %902 = vmatprep.subr.bf16.mxu0 0
      %903 = vmatpush1.bf16.msra.mxu0 %v853
      %904 = vmatprep.subr.bf16.mxu0 0
      %905 = vmatpush1.bf16.msra.mxu0 %v854
      %906 = vmatprep.subr.bf16.mxu0 0
      %907 = vmatpush1.bf16.msra.mxu0 %v855
      %908 = vmatprep.subr.bf16.mxu0 0
      %909 = vmatpush1.bf16.msra.mxu0 %v856
      %910 = vmatprep.subr.bf16.mxu0 0
      %911 = vmatpush1.bf16.msra.mxu0 %v857
      %912 = vmatprep.subr.bf16.mxu0 0
      %913 = vmatpush1.bf16.msra.mxu0 %v858
      %914 = vmatprep.subr.bf16.mxu0 0
      %915 = vmatpush1.bf16.msra.mxu0 %v859
      %916 = vmatprep.subr.bf16.mxu0 0
      %917 = vmatpush1.bf16.msra.mxu0 %v860
      %918 = vmatprep.subr.bf16.mxu0 0
      %919 = vmatpush1.bf16.msra.mxu0 %v861
      %920 = vmatprep.subr.bf16.mxu0 0
      %921 = vmatpush1.bf16.msra.mxu0 %v862
      %922 = vmatprep.subr.bf16.mxu0 0
      %923 = vmatpush1.bf16.msra.mxu0 %v863
      %924 = vmatprep.subr.bf16.mxu0 0
      %925 = vmatpush1.bf16.msra.mxu0 %v864
      %926 = vmatprep.subr.bf16.mxu0 0
      %927 = vmatpush1.bf16.msra.mxu0 %v865
      %928 = vmatprep.subr.bf16.mxu0 0
      %929 = vmatpush1.bf16.msra.mxu0 %v866
      %930 = vmatprep.subr.bf16.mxu0 0
      %931 = vmatpush1.bf16.msra.mxu0 %v867
      %932 = vmatprep.mubr.bf16.mxu0 %v750
      %933 = vmatmul.mubr.bf16.gmra.mrb[0].mxu0 %v747
      %v934 = vpop.f32.mrb[0].mxu0
      %v935 = vadd.f32 %v743, %v934
      %v936 = vpop.f32.mrb[0].mxu0
      %v937 = vpop.f32.mrb[0].mxu0
      %v938 = vadd.f32 %v743, %v937
      %v939 = vpop.f32.mrb[0].mxu0
      %940 = vdwg.mxu0
      %941 = vmatprep.subr.bf16.mxu0 0
      %942 = vmatpush1.bf16.msra.mxu0 %v868
      %943 = vmatprep.subr.bf16.mxu0 0
      %944 = vmatpush1.bf16.msra.mxu0 %v869
      %945 = vmatprep.subr.bf16.mxu0 0
      %946 = vmatpush1.bf16.msra.mxu0 %v870
      %947 = vmatprep.subr.bf16.mxu0 0
      %948 = vmatpush1.bf16.msra.mxu0 %v871
      %949 = vmatprep.subr.bf16.mxu0 0
      %950 = vmatpush1.bf16.msra.mxu0 %v872
      %951 = vmatprep.subr.bf16.mxu0 0
      %952 = vmatpush1.bf16.msra.mxu0 %v873
      %953 = vmatprep.subr.bf16.mxu0 0
      %954 = vmatpush1.bf16.msra.mxu0 %v874
      %955 = vmatprep.subr.bf16.mxu0 0
      %956 = vmatpush1.bf16.msra.mxu0 %v875
      %957 = vmatprep.subr.bf16.mxu0 0
      %958 = vmatpush1.bf16.msra.mxu0 0
      %959 = vmatprep.subr.bf16.mxu0 0
      %960 = vmatpush1.bf16.msra.mxu0 0
      %961 = vmatprep.subr.bf16.mxu0 0
      %962 = vmatpush1.bf16.msra.mxu0 0
      %963 = vmatprep.subr.bf16.mxu0 0
      %964 = vmatpush1.bf16.msra.mxu0 0
      %965 = vmatprep.subr.bf16.mxu0 0
      %966 = vmatpush1.bf16.msra.mxu0 0
      %967 = vmatprep.subr.bf16.mxu0 0
      %968 = vmatpush1.bf16.msra.mxu0 0
      %969 = vmatprep.subr.bf16.mxu0 0
      %970 = vmatpush1.bf16.msra.mxu0 0
      %971 = vmatprep.subr.bf16.mxu0 0
      %972 = vmatpush1.bf16.msra.mxu0 0
      %973 = vmatprep.mubr.bf16.mxu0 0
      %974 = vmatmul.mubr.bf16.gmra.mrb[0].mxu0 %v752
      %v975 = vpop.f32.mrb[0].mxu0
      %v976 = vadd.f32 %v935, %v975
      %v977 = vpop.f32.mrb[0].mxu0
      %v978 = vpop.f32.mrb[0].mxu0
      %v979 = vadd.f32 %v938, %v978
      %v980 = vpop.f32.mrb[0].mxu0
      %981 = vdwg.mxu0
      %v982 = vmax.f32 %v976, 0.0
      %v983 = vmax.f32 %v979, 0.0
      %v984 = vadd.f32 %v982, %v674
      %v985 = vadd.f32 %v983, %v678
      %v986 = vmax.f32 %v984, 0.0
      %v987 = vmax.f32 %v985, 0.0
      %988 = vst [vmem:[%s262] sm:$0xff] %v986
      %989 = vst [vmem:[%s262 + $0x8] sm:$0xff] %v987
      %990 = vst [vmem:[#allocation2] sm:$0xff] %v273
      %991 = vst [vmem:[#allocation3] sm:$0xff] %v682
      %s992 = smul.u32 2, %s21
      %p993 = scmp.lt.s32.totalorder %s20, 1
      %s994 = scalar_select %p993, %s20, 1
      %p995 = scmp.lt.s32.totalorder %s992, 1
      %s996 = scalar_select %p995, %s992, 1
      %s997 = smul.addr %s994, 2
      %s998 = sadd.s32 %s996, %s997
      %s999 = smul.addr %s998, 8
      %s1000 = scalar_lea.vmem %s5, %s999
      // Predicated region
      $region45: #{temporal_block_forward.1} parent=39 // pred_check
        %p1001 = pneg %p160
      $region46: #{temporal_block_forward.1} parent=39 // pred_check_branch
        %1003 = sbr.rel (%p1001) target = $region48
      $region47: #{temporal_block_forward.1} parent=39 // pred_region
        %s1004 = smul.u32 2, %s21
      $region48: #{temporal_block_forward.1} parent=39 // pred_fallthru
        _
    $region40: #{temporal_block_forward.1} parent=5 // pred_fallthru
      _
    %p1005 = scmp.le.s32.totalorder 2, %s11
    // Predicated region
    $region49: #{temporal_block_forward.1} parent=5 // pred_check
      %p1006 = pneg %p1005
    $region50: #{temporal_block_forward.1} parent=5 // pred_check_branch
      %1008 = sbr.rel (%p1006) target = $region52
    $region51: #{temporal_block_forward.1} parent=5 // pred_region
      %s1009 = ssub.s32 %s11, 2
      // Predicated region
      $region53: #{temporal_block_forward.1} parent=51 // pred_check
        %p1010 = pneg %p166
      $region54: #{temporal_block_forward.1} parent=51 // pred_check_branch
        %1012 = sbr.rel (%p1010) target = $region56
      $region55: #{temporal_block_forward.1} parent=51 // pred_region
        %s1013 = smul.u32 2, %s23
        %p1014 = scmp.lt.s32.totalorder %s22, 1
        %s1015 = scalar_select %p1014, %s22, 1
        %p1016 = scmp.lt.s32.totalorder %s1013, 1
        %s1017 = scalar_select %p1016, %s1013, 1
        %s1018 = smul.addr %s1015, 2
        %s1019 = sadd.s32 %s1017, %s1018
        %s1020 = smul.addr %s1019, 8
        %s1021 = scalar_lea.vmem %s5, %s1020
      $region56: #{temporal_block_forward.1} parent=51 // pred_fallthru
        _
    $region52: #{temporal_block_forward.1} parent=5 // pred_fallthru
      _
  $region6: #{temporal_block_forward.1} parent=0 // loop_footer
    %s15 = sadd.s32 1, %s11
  $region7: #{temporal_block_forward.1} parent=0 // loop_footer_branch
    %10 = sbr.rel target = $region3
  $region8: #{temporal_block_forward.1} parent=0 // loop_exit
    _

</llo_original>
